<compile_context>
chip_gen: v5e
topology: v5e:2x2
jax: 0.10.0
libtpu: 0.0.40
codegen_flags: <defaults>
</compile_context>

<pallas_src>
import math

import jax
import jax.numpy as jnp
from jax import lax
from jax.experimental import pallas as pl
from jax.experimental.pallas import tpu as pltpu


# ---- small problem sizes consistent with the module -------------------------
SEQ = 8
BATCH = 2
MEM_DIM = 32
CAND_DIM = 32


def _attend_one(Mb, xb, mb, pool_row_ref, alpha_row_ref):
    """One batch element.

    Mb : (S, Dm) f32  memory bank for this batch element
    xb : (1, Dm) f32  (already transformed) candidate row
    mb : (1, S)  f32 or None  multiplicative mask row ('general2' only)
    """
    # scores = xb @ Mb.T expressed as an NT dot_general (contract last dims of both
    # operands) so no transpose of Mb is materialised.
    sc = lax.dot_general(xb, Mb, (((1,), (1,)), ((), ())),
                         preferred_element_type=jnp.float32)            # (1, S)
    if mb is not None:
        sc = sc * mb                                                     # general2: scores * mask
    e = jnp.exp(sc - jnp.max(sc, axis=-1, keepdims=True))
    if mb is not None:
        # Reference does softmax(scores*mask) -> *mask -> renormalise; the first
        # normalisation cancels exactly, so only the masked exp / masked sum survives.
        e = e * mb
    denom = jnp.sum(e, axis=-1, keepdims=True)
    alpha = e * pl.reciprocal(denom, approx=False)                       # exact: keeps 1e-4 parity
    pool = jnp.dot(alpha, Mb, preferred_element_type=jnp.float32)        # (1, Dm)
    pool_row_ref[...] = pool.astype(pool_row_ref.dtype)
    alpha_row_ref[...] = alpha.astype(alpha_row_ref.dtype)


def _dot_kernel(M_ref, x_ref, pool_ref, alpha_ref):
    x = x_ref[...].astype(jnp.float32)
    for b in range(pool_ref.shape[0]):                  # static unroll, tiny batch
        _attend_one(M_ref[b].astype(jnp.float32), x[b:b + 1, :], None,
                    pool_ref.at[b:b + 1, :], alpha_ref.at[b:b + 1, :])


def _general_kernel(M_ref, x_ref, w_ref, pool_ref, alpha_ref):
    # One fused transform matmul for the whole batch: (B, Dc) @ (Dc, Dm).
    xt = jnp.dot(x_ref[...].astype(jnp.float32), w_ref[...],
                 preferred_element_type=jnp.float32)
    for b in range(pool_ref.shape[0]):
        _attend_one(M_ref[b].astype(jnp.float32), xt[b:b + 1, :], None,
                    pool_ref.at[b:b + 1, :], alpha_ref.at[b:b + 1, :])


def _general2_kernel(M_ref, x_ref, mask_ref, w_ref, bias_ref, pool_ref, alpha_ref):
    xt = jnp.dot(x_ref[...].astype(jnp.float32), w_ref[...],
                 preferred_element_type=jnp.float32) + bias_ref[...]
    mask = mask_ref[...].astype(jnp.float32)
    for b in range(pool_ref.shape[0]):
        _attend_one(M_ref[b].astype(jnp.float32), xt[b:b + 1, :], mask[b:b + 1, :],
                    pool_ref.at[b:b + 1, :], alpha_ref.at[b:b + 1, :])


def matching_attention(M, x, mask=None, params=None, att_type="general2"):
    """Pallas forward of MatchingAttention.

    M: (S, B, mem_dim), x: (B, cand_dim), mask: (B, S) or None.
    Returns (attn_pool (B, mem_dim), alpha (B, 1, S)).
    """
    S, B, Dm = M.shape

    # Layout plumbing in the wrapper (free for XLA): batch-major memory bank so the
    # kernel reads lane-dense (S, Dm) tiles per batch element.
    Mb = jnp.transpose(M, (1, 0, 2)).astype(jnp.float32)               # (B, S, Dm)
    x = x.astype(jnp.float32)

    if att_type == "dot":
        kernel, inputs = _dot_kernel, (Mb, x)
    elif att_type == "general":
        wt = params["w"].T.astype(jnp.float32)                          # (Dc, Dm): y = x @ W^T
        kernel, inputs = _general_kernel, (Mb, x, wt)
    elif att_type == "general2":
        if mask is None:
            mask = jnp.ones((B, S), dtype=jnp.float32)
        wt = params["w"].T.astype(jnp.float32)
        bias = params["b"].reshape(1, Dm).astype(jnp.float32)
        kernel, inputs = _general2_kernel, (Mb, x, mask.astype(jnp.float32), wt, bias)
    else:
        # TODO(synk): 'concat' attention path not implemented in the Pallas kernel.
        raise NotImplementedError(f"att_type={att_type!r} not implemented")

    vmem = lambda: pl.BlockSpec(memory_space=pltpu.MemorySpace.VMEM)    # whole array in VMEM

    pool, alpha = pl.pallas_call(
        kernel,
        out_shape=(jax.ShapeDtypeStruct((B, Dm), jnp.float32),
                   jax.ShapeDtypeStruct((B, S), jnp.float32)),
        in_specs=[vmem() for _ in inputs],
        out_specs=(vmem(), vmem()),
        # No grid: one invocation handles the whole (tiny) batch.
    )(*inputs)

    return pool, alpha.reshape(B, 1, S)


def _reference(M, x, mask, params, att_type):
    """Pure-JAX mirror of the PyTorch forward."""
    S, B, Dm = M.shape
    if mask is None:
        mask = jnp.ones((B, S), dtype=M.dtype)
    M_ = jnp.transpose(M, (1, 2, 0))                                    # (B, Dm, S)
    if att_type == "dot":
        x_ = x[:, None, :]
    elif att_type == "general":
        x_ = (x @ params["w"].T)[:, None, :]
    elif att_type == "general2":
        x_ = (x @ params["w"].T + params["b"])[:, None, :]
    else:
        raise NotImplementedError(att_type)
    scores = jnp.einsum("bij,bjk->bik", x_, M_)                         # (B, 1, S)
    if att_type == "general2":
        m3 = mask[:, None, :]
        alpha_ = jax.nn.softmax(scores * m3, axis=2)
        alpha_m = alpha_ * m3
        alpha = alpha_m / jnp.sum(alpha_m, axis=2, keepdims=True)
    else:
        alpha = jax.nn.softmax(scores, axis=2)
    attn_pool = jnp.einsum("bis,bsd->bid", alpha, jnp.transpose(M, (1, 0, 2)))[:, 0, :]
    return attn_pool, alpha


if __name__ == "__main__":
    key = jax.random.PRNGKey(0)
    k_m, k_x, k_w1, k_w2, k_b2 = jax.random.split(key, 5)

    M = jax.random.normal(k_m, (SEQ, BATCH, MEM_DIM), dtype=jnp.float32)
    x = jax.random.normal(k_x, (BATCH, CAND_DIM), dtype=jnp.float32)
    # keep first 6 tokens of batch 0, all 8 of batch 1 (no fully-masked row -> no 0/0)
    mask = jnp.stack([
        jnp.concatenate([jnp.ones((6,)), jnp.zeros((2,))]),
        jnp.ones((SEQ,)),
    ]).astype(jnp.float32)

    w_scale = 1.0 / math.sqrt(CAND_DIM)
    params_general = {
        "w": jax.random.normal(k_w1, (MEM_DIM, CAND_DIM), dtype=jnp.float32) * w_scale,
    }
    params_general2 = {
        "w": jax.random.normal(k_w2, (MEM_DIM, CAND_DIM), dtype=jnp.float32) * w_scale,
        "b": jax.random.normal(k_b2, (MEM_DIM,), dtype=jnp.float32) * 0.01,
    }

    cases = (
        ("dot", None, None),
        ("general", params_general, None),
        ("general2", params_general2, mask),
    )
    for att_type, prm, msk in cases:
        pool, alpha = matching_attention(M, x, mask=msk, params=prm, att_type=att_type)
        pool, alpha = jax.block_until_ready((pool, alpha))
        ref_pool, ref_alpha = _reference(M, x, msk, prm, att_type)
        assert pool.shape == (BATCH, MEM_DIM) and alpha.shape == (BATCH, 1, SEQ)
        assert jnp.allclose(pool, ref_pool, atol=1e-4, rtol=1e-4), f"{att_type}: attn_pool mismatch"
        assert jnp.allclose(alpha, ref_alpha, atol=1e-4, rtol=1e-4), f"{att_type}: alpha mismatch"

    print("KERNEL_OK")
</pallas_src>

<mosaic_0001>
module attributes {stable_mosaic.version = 11 : i64} {
  func.func @_dot_kernel(%arg0: memref<2x8x32xf32, #tpu.memory_space<vmem>>, %arg1: memref<2x32xf32, #tpu.memory_space<vmem>>, %arg2: memref<2x32xf32, #tpu.memory_space<vmem>>, %arg3: memref<2x8xf32, #tpu.memory_space<vmem>>) attributes {dimension_semantics = [], scalar_prefetch = 0 : i64, scratch_operands = 0 : i64, tpu.core_type = #tpu.core_type<tc>} {
    %c0 = arith.constant 0 : index
    %c0_0 = arith.constant 0 : index
    %0 = vector.load %arg1[%c0, %c0_0] : memref<2x32xf32, #tpu.memory_space<vmem>>, vector<2x32xf32>
    %c0_1 = arith.constant 0 : index
    %c0_2 = arith.constant 0 : index
    %c0_3 = arith.constant 0 : index
    %1 = vector.load %arg0[%c0_1, %c0_2, %c0_3] : memref<2x8x32xf32, #tpu.memory_space<vmem>>, vector<1x8x32xf32>
    %2 = vector.shape_cast %1 : vector<1x8x32xf32> to vector<8x32xf32>
    %3 = vector.extract_strided_slice %0 {offsets = [0, 0], sizes = [1, 32], strides = [1, 1]} : vector<2x32xf32> to vector<1x32xf32>
    %cst = arith.constant dense<0.000000e+00> : vector<1x8xf32>
    %4 = tpu.matmul %3, %2, %cst {dimension_numbers = #tpu.dot_dimension_numbers<[1], [1], [0], [0], [0, 0, 1, 0], [], []>} : vector<1x32xf32>, vector<8x32xf32>, vector<1x8xf32> -> vector<1x8xf32>
    %cst_4 = arith.constant dense<0xFF800000> : vector<1xf32>
    %5 = vector.multi_reduction <maximumf>, %4, %cst_4 [1] : vector<1x8xf32> to vector<1xf32>
    %6 = vector.shape_cast %5 : vector<1xf32> to vector<1x1xf32>
    %7 = vector.broadcast %6 : vector<1x1xf32> to vector<1x8xf32>
    %8 = arith.subf %4, %7 : vector<1x8xf32>
    %9 = math.exp %8 : vector<1x8xf32>
    %cst_5 = arith.constant dense<0.000000e+00> : vector<1xf32>
    %10 = vector.multi_reduction <add>, %9, %cst_5 [1] : vector<1x8xf32> to vector<1xf32>
    %11 = vector.shape_cast %10 : vector<1xf32> to vector<1x1xf32>
    %12 = tpu.reciprocal %11 : vector<1x1xf32> -> vector<1x1xf32>
    %13 = vector.broadcast %12 : vector<1x1xf32> to vector<1x8xf32>
    %14 = arith.mulf %9, %13 : vector<1x8xf32>
    %cst_6 = arith.constant dense<0.000000e+00> : vector<1x32xf32>
    %15 = tpu.matmul %14, %2, %cst_6 {dimension_numbers = #tpu.dot_dimension_numbers<[1], [0], [0], [1], [0, 0, 1, 1], [], []>} : vector<1x8xf32>, vector<8x32xf32>, vector<1x32xf32> -> vector<1x32xf32>
    %c0_7 = arith.constant 0 : index
    %c0_8 = arith.constant 0 : index
    %16 = vector.load %arg2[%c0_7, %c0_8] : memref<2x32xf32, #tpu.memory_space<vmem>>, vector<1x32xf32>
    tpu.vector_store %arg2[%c0_7, %c0_8], %15 {strides = array<i32>} : memref<2x32xf32, #tpu.memory_space<vmem>>, vector<1x32xf32>,
    %c0_9 = arith.constant 0 : index
    %c0_10 = arith.constant 0 : index
    %17 = vector.load %arg3[%c0_9, %c0_10] : memref<2x8xf32, #tpu.memory_space<vmem>>, vector<1x8xf32>
    tpu.vector_store %arg3[%c0_9, %c0_10], %14 {strides = array<i32>} : memref<2x8xf32, #tpu.memory_space<vmem>>, vector<1x8xf32>,
    %c1 = arith.constant 1 : index
    %c0_11 = arith.constant 0 : index
    %c0_12 = arith.constant 0 : index
    %18 = vector.load %arg0[%c1, %c0_11, %c0_12] : memref<2x8x32xf32, #tpu.memory_space<vmem>>, vector<1x8x32xf32>
    %19 = vector.shape_cast %18 : vector<1x8x32xf32> to vector<8x32xf32>
    %20 = vector.extract_strided_slice %0 {offsets = [1, 0], sizes = [1, 32], strides = [1, 1]} : vector<2x32xf32> to vector<1x32xf32>
    %cst_13 = arith.constant dense<0.000000e+00> : vector<1x8xf32>
    %21 = tpu.matmul %20, %19, %cst_13 {dimension_numbers = #tpu.dot_dimension_numbers<[1], [1], [0], [0], [0, 0, 1, 0], [], []>} : vector<1x32xf32>, vector<8x32xf32>, vector<1x8xf32> -> vector<1x8xf32>
    %cst_14 = arith.constant dense<0xFF800000> : vector<1xf32>
    %22 = vector.multi_reduction <maximumf>, %21, %cst_14 [1] : vector<1x8xf32> to vector<1xf32>
    %23 = vector.shape_cast %22 : vector<1xf32> to vector<1x1xf32>
    %24 = vector.broadcast %23 : vector<1x1xf32> to vector<1x8xf32>
    %25 = arith.subf %21, %24 : vector<1x8xf32>
    %26 = math.exp %25 : vector<1x8xf32>
    %cst_15 = arith.constant dense<0.000000e+00> : vector<1xf32>
    %27 = vector.multi_reduction <add>, %26, %cst_15 [1] : vector<1x8xf32> to vector<1xf32>
    %28 = vector.shape_cast %27 : vector<1xf32> to vector<1x1xf32>
    %29 = tpu.reciprocal %28 : vector<1x1xf32> -> vector<1x1xf32>
    %30 = vector.broadcast %29 : vector<1x1xf32> to vector<1x8xf32>
    %31 = arith.mulf %26, %30 : vector<1x8xf32>
    %cst_16 = arith.constant dense<0.000000e+00> : vector<1x32xf32>
    %32 = tpu.matmul %31, %19, %cst_16 {dimension_numbers = #tpu.dot_dimension_numbers<[1], [0], [0], [1], [0, 0, 1, 1], [], []>} : vector<1x8xf32>, vector<8x32xf32>, vector<1x32xf32> -> vector<1x32xf32>
    %c1_17 = arith.constant 1 : index
    %c0_18 = arith.constant 0 : index
    %33 = vector.load %arg2[%c1_17, %c0_18] : memref<2x32xf32, #tpu.memory_space<vmem>>, vector<1x32xf32>
    tpu.vector_store %arg2[%c1_17, %c0_18], %32 {strides = array<i32>} : memref<2x32xf32, #tpu.memory_space<vmem>>, vector<1x32xf32>,
    %c1_19 = arith.constant 1 : index
    %c0_20 = arith.constant 0 : index
    %34 = vector.load %arg3[%c1_19, %c0_20] : memref<2x8xf32, #tpu.memory_space<vmem>>, vector<1x8xf32>
    tpu.vector_store %arg3[%c1_19, %c0_20], %31 {strides = array<i32>} : memref<2x8xf32, #tpu.memory_space<vmem>>, vector<1x8xf32>,
    return
  }
}

</mosaic_0001>

<llo_original>
// kernel: tpu_custom_call.1
$region0: #{tpu_custom_call.1}
  #allocation0 [shape = 'u32[]', space=smem, size = 0x4, offset = 0x4, fixed_abs, tag = 'smem constant byte address 0x4 - core index']
  #allocation1 [shape = 'u32[72,128]{1,0:T(1,128)}', space=vmem, size = 0x9000, scoped, tag = 'internal scratch']
  %s0 = inlined_call_operand.hbm [shape: f32[2,8,32], index: 0, kind: input, shape index: {}]
  %s1 = inlined_call_operand.hbm [shape: f32[2,32], index: 1, kind: input, shape index: {}]
  %s2 = inlined_call_operand.hbm [shape: f32[2,32], index: 2, kind: output, shape index: {0}]
  %s3 = inlined_call_operand.hbm [shape: f32[2,8], index: 3, kind: output, shape index: {1}]
  %4 = xla_tuple %s2, %s3
  %s5 = sld [smem:[#allocation0]]
  $region34: #{tpu_custom_call.1} parent=0
    _
  %s7 = ssub.s32 1, %s5
  %s8 = scalar_select 0, %s7, %s5
  $region1: #{tpu_custom_call.1} parent=0
    #allocation2 [shape = 'u8[8192]{0}', space=vmem, size = 0x2000, scoped, tag = 'input window, operand 0, single buffered']
    #allocation3 [shape = 's32[1]{0}', space=sflag, size = 0x4, scoped, tag = 'scoped memory for tpu_custom_call.1']
    #allocation4 [shape = 's32[1]{0}', space=sflag, size = 0x4, scoped, tag = 'scoped memory for tpu_custom_call.1']
    #allocation5 [shape = 'u8[1024]{0}', space=vmem, size = 0x400, scoped, tag = 'input window, operand 1, single buffered']
    #allocation6 [shape = 's32[1]{0}', space=sflag, size = 0x4, scoped, tag = 'scoped memory for tpu_custom_call.1']
    #allocation7 [shape = 'u8[1024]{0}', space=vmem, size = 0x400, scoped, tag = 'output window, operand 0, single buffered']
    #allocation8 [shape = 'u8[1024]{0}', space=vmem, size = 0x400, scoped, tag = 'output window, operand 1, single buffered']
    #allocation9 [shape = 's32[1]{0}', space=sflag, size = 0x4, scoped, tag = 'scoped memory for tpu_custom_call.1']
    %9 = vsyncpa [#allocation3], 0
    %10 = vsyncpa [#allocation6], 0
    %11 = vsyncpa [#allocation4], 0
    %12 = vsyncpa [#allocation9], 0
    // Predicated region
    $region2: #{tpu_custom_call.1} parent=1 // pred_check
      _
    $region3: #{tpu_custom_call.1} parent=1 // pred_check_branch
      %14 = sbr.rel (0) target = $region5
    $region4: #{tpu_custom_call.1} parent=1 // pred_region
      %16 = vsyncadd [#allocation3], 0
      %s17 = sshll.u32 %s0, 4
      %s18 = int_to_ptr.hbm [resolvable:$true] %s17
      %s19 = sshll.u32 [#allocation2], 4
      %s20 = int_to_ptr.vmem [resolvable:$true] %s19
      %25 = dma.hbm_to_vmem [thread:$0]  %s18, 256, %s20, [#allocation3], 128, 128, 8
    $region5: #{tpu_custom_call.1} parent=1 // pred_fallthru
      _
    // Predicated region
    $region6: #{tpu_custom_call.1} parent=1 // pred_check
      _
    $region7: #{tpu_custom_call.1} parent=1 // pred_check_branch
      %27 = sbr.rel (0) target = $region9
    $region8: #{tpu_custom_call.1} parent=1 // pred_region
      %29 = vsyncadd [#allocation6], 0
      %s31 = sshll.u32 %s1, 4
      %s32 = int_to_ptr.hbm [resolvable:$true] %s31
      %s33 = sshll.u32 [#allocation5], 4
      %s34 = int_to_ptr.vmem [resolvable:$true] %s33
      %36 = dma.hbm_to_vmem [thread:$0]  %s32, 32, %s34, [#allocation6]
    $region9: #{tpu_custom_call.1} parent=1 // pred_fallthru
      _
    // Predicated region
    $region10: #{tpu_custom_call.1} parent=1 // pred_check
      _
    $region11: #{tpu_custom_call.1} parent=1 // pred_check_branch
      %38 = sbr.rel (0) target = $region13
    $region12: #{tpu_custom_call.1} parent=1 // pred_region
      %40 = dma.done [#allocation3], 256
    $region13: #{tpu_custom_call.1} parent=1 // pred_fallthru
      _
    // Predicated region
    $region14: #{tpu_custom_call.1} parent=1 // pred_check
      _
    $region15: #{tpu_custom_call.1} parent=1 // pred_check_branch
      %42 = sbr.rel (0) target = $region17
    $region16: #{tpu_custom_call.1} parent=1 // pred_region
      %44 = dma.done [#allocation6], 32
    $region17: #{tpu_custom_call.1} parent=1 // pred_fallthru
      _
    %v45 = vld [vmem:[#allocation5] sm:$0x3]
    %v46 = vld [vmem:[#allocation2] sm:$0xff]
    %vm47 = vcmask 261120
    %v49 = vsel %vm47, %v45, 0
    %v52 = vsel %vm47, %v46, 0
    %54 = vmatpush.xpose.msra.mxu0 0.0
    %55 = vmatpush.xpose.msra.mxu0 0.0
    %56 = vmatpush.xpose.msra.mxu0 0.0
    %57 = vmatpush.xpose.msra.mxu0 0.0
    %58 = vmatpush.xpose.msra.mxu0 0.0
    %59 = vmatpush.xpose.msra.mxu0 0.0
    %60 = vmatpush.xpose.msra.mxu0 0.0
    %61 = vmatpush.xpose.msra.mxu0 0.0
    %62 = vmatpush.xpose.msra.mxu0 0.0
    %63 = vmatpush.xpose.msra.mxu0 0.0
    %64 = vmatpush.xpose.msra.mxu0 0.0
    %65 = vmatpush.xpose.msra.mxu0 0.0
    %66 = vmatpush.xpose.msra.mxu0 0.0
    %67 = vmatpush.xpose.msra.mxu0 0.0
    %68 = vmatpush.xpose.msra.mxu0 0.0
    %69 = vmatpush.xpose.msra.mxu0 %v52
    %70 = vmatmul.f32.gmra.mxu0 %v49
    %v71 = vpop.f32.mrf.mxu0
    %v72 = vadd.f32 0.0, %v71
    %73 = vdwg.mxu0
    %vm74 = vcmask 57344
    %v75 = vsel %vm74, %v72, -inf
    %76 = vmax.xlane.f32.xlu0 %v75
    %v77 = vpop.xlane.xlu0 %76
    %v78 = vsub.f32 %v72, %v77
    %v79 = vmul.f32 %v78, 1.442695
    %v80 = vpow.pop %v79
    %v81 = vsel %vm74, %v80, 0.0
    %82 = vadd.xlane.f32.xlu0 %v81
    %v83 = vpop.xlane.xlu0 %82
    %v84 = vrcp.pop %v83
    %v85 = vmul.f32 %v83, %v84
    %v86 = vsub.f32 1.0, %v85
    %v87 = vmul.f32 %v84, %v86
    %v88 = vadd.f32 %v84, %v87
    %vm89 = vweird.f32 %v83
    %vm90 = vweird.f32 %v84
    %vm91 = vmor %vm89, %vm90
    %v92 = vsel %vm91, %v84, %v88
    %v93 = vand.u32 2147483647, %v83
    %vm94 = vcmp.eq.f32.partialorder %v93, 8.507059e+37
    %v95 = vand.u32 %v83, 2147483648
    %v96 = vor.u32 1.1754944e-38, %v95
    %v97 = vsel %vm94, %v96, %v92
    %v98 = vmul.f32 %v80, %v97
    %vm99 = vcmask 64512
    %v101 = vsel %vm99, %v98, 0
    %103 = vmatpush.msra.mxu0 0.0
    %104 = vmatpush.msra.mxu0 0.0
    %105 = vmatpush.msra.mxu0 0.0
    %106 = vmatpush.msra.mxu0 0.0
    %107 = vmatpush.msra.mxu0 0.0
    %108 = vmatpush.msra.mxu0 0.0
    %109 = vmatpush.msra.mxu0 0.0
    %110 = vmatpush.msra.mxu0 0.0
    %111 = vmatpush.msra.mxu0 0.0
    %112 = vmatpush.msra.mxu0 0.0
    %113 = vmatpush.msra.mxu0 0.0
    %114 = vmatpush.msra.mxu0 0.0
    %115 = vmatpush.msra.mxu0 0.0
    %116 = vmatpush.msra.mxu0 0.0
    %117 = vmatpush.msra.mxu0 0.0
    %118 = vmatpush.msra.mxu0 %v46
    %119 = vmatmul.f32.gmra.mxu0 %v101
    %v120 = vpop.f32.mrf.mxu0
    %v121 = vadd.f32 0.0, %v120
    %122 = vdwg.mxu0
    %vm123 = vcmask 253952
    %124 = vst.msk [vmem:[#allocation7] sm:$0x1] %vm123, %v121
    %125 = vst.msk [vmem:[#allocation8] sm:$0x1] %vm74, %v98
    %s126 = scalar_lea.vmem [#allocation2], 8
    %v127 = vld [vmem:[%s126] sm:$0xff]
    %v128 = vrot.slane %v45, 1
    %v129 = vsel %vm47, %v128, 0
    %v132 = vsel %vm47, %v127, 0
    %134 = vmatpush.xpose.msra.mxu0 0.0
    %135 = vmatpush.xpose.msra.mxu0 0.0
    %136 = vmatpush.xpose.msra.mxu0 0.0
    %137 = vmatpush.xpose.msra.mxu0 0.0
    %138 = vmatpush.xpose.msra.mxu0 0.0
    %139 = vmatpush.xpose.msra.mxu0 0.0
    %140 = vmatpush.xpose.msra.mxu0 0.0
    %141 = vmatpush.xpose.msra.mxu0 0.0
    %142 = vmatpush.xpose.msra.mxu0 0.0
    %143 = vmatpush.xpose.msra.mxu0 0.0
    %144 = vmatpush.xpose.msra.mxu0 0.0
    %145 = vmatpush.xpose.msra.mxu0 0.0
    %146 = vmatpush.xpose.msra.mxu0 0.0
    %147 = vmatpush.xpose.msra.mxu0 0.0
    %148 = vmatpush.xpose.msra.mxu0 0.0
    %149 = vmatpush.xpose.msra.mxu0 %v132
    %150 = vmatmul.f32.gmra.mxu0 %v129
    %v151 = vpop.f32.mrf.mxu0
    %v152 = vadd.f32 0.0, %v151
    %153 = vdwg.mxu0
    %v154 = vsel %vm74, %v152, -inf
    %155 = vmax.xlane.f32.xlu0 %v154
    %v156 = vpop.xlane.xlu0 %155
    %v157 = vsub.f32 %v152, %v156
    %v158 = vmul.f32 %v157, 1.442695
    %v159 = vpow.pop %v158
    %v160 = vsel %vm74, %v159, 0.0
    %161 = vadd.xlane.f32.xlu0 %v160
    %v162 = vpop.xlane.xlu0 %161
    %v163 = vrcp.pop %v162
    %v164 = vmul.f32 %v162, %v163
    %v165 = vsub.f32 1.0, %v164
    %v166 = vmul.f32 %v163, %v165
    %v167 = vadd.f32 %v163, %v166
    %vm168 = vweird.f32 %v162
    %vm169 = vweird.f32 %v163
    %vm170 = vmor %vm168, %vm169
    %v171 = vsel %vm170, %v163, %v167
    %v172 = vand.u32 2147483647, %v162
    %vm173 = vcmp.eq.f32.partialorder %v172, 8.507059e+37
    %v174 = vand.u32 %v162, 2147483648
    %v175 = vor.u32 1.1754944e-38, %v174
    %v176 = vsel %vm173, %v175, %v171
    %v177 = vmul.f32 %v159, %v176
    %v179 = vsel %vm99, %v177, 0
    %181 = vmatpush.msra.mxu0 0.0
    %182 = vmatpush.msra.mxu0 0.0
    %183 = vmatpush.msra.mxu0 0.0
    %184 = vmatpush.msra.mxu0 0.0
    %185 = vmatpush.msra.mxu0 0.0
    %186 = vmatpush.msra.mxu0 0.0
    %187 = vmatpush.msra.mxu0 0.0
    %188 = vmatpush.msra.mxu0 0.0
    %189 = vmatpush.msra.mxu0 0.0
    %190 = vmatpush.msra.mxu0 0.0
    %191 = vmatpush.msra.mxu0 0.0
    %192 = vmatpush.msra.mxu0 0.0
    %193 = vmatpush.msra.mxu0 0.0
    %194 = vmatpush.msra.mxu0 0.0
    %195 = vmatpush.msra.mxu0 0.0
    %196 = vmatpush.msra.mxu0 %v127
    %197 = vmatmul.f32.gmra.mxu0 %v179
    %v198 = vpop.f32.mrf.mxu0
    %v199 = vadd.f32 0.0, %v198
    %200 = vdwg.mxu0
    %201 = vst.msk [vmem:[#allocation7 + $0x1] sm:$0x1] %vm123, %v199
    %202 = vst.msk [vmem:[#allocation8 + $0x1] sm:$0x1] %vm74, %v177
    // Predicated region
    $region18: #{tpu_custom_call.1} parent=1 // pred_check
      _
    $region19: #{tpu_custom_call.1} parent=1 // pred_check_branch
      %204 = sbr.rel (0) target = $region21
    $region20: #{tpu_custom_call.1} parent=1 // pred_region
      %206 = vsyncadd [#allocation4], 0
      %s208 = sshll.u32 [#allocation7], 4
      %s209 = int_to_ptr.vmem [resolvable:$true] %s208
      %s210 = sshll.u32 %s2, 4
      %s211 = int_to_ptr.hbm [resolvable:$true] %s210
      %213 = dma.vmem_to_hbm [thread:$0]  %s209, 32, %s211, [#allocation4]
    $region21: #{tpu_custom_call.1} parent=1 // pred_fallthru
      _
    // Predicated region
    $region22: #{tpu_custom_call.1} parent=1 // pred_check
      _
    $region23: #{tpu_custom_call.1} parent=1 // pred_check_branch
      %215 = sbr.rel (0) target = $region25
    $region24: #{tpu_custom_call.1} parent=1 // pred_region
      %217 = vsyncadd [#allocation9], 0
      %s219 = sshll.u32 [#allocation8], 4
      %s220 = int_to_ptr.vmem [resolvable:$true] %s219
      %s221 = sshll.u32 %s3, 4
      %s222 = int_to_ptr.hbm [resolvable:$true] %s221
      %224 = dma.vmem_to_hbm [thread:$0]  %s220, 32, %s222, [#allocation9]
    $region25: #{tpu_custom_call.1} parent=1 // pred_fallthru
      _
    // Predicated region
    $region26: #{tpu_custom_call.1} parent=1 // pred_check
      _
    $region27: #{tpu_custom_call.1} parent=1 // pred_check_branch
      %226 = sbr.rel (0) target = $region29
    $region28: #{tpu_custom_call.1} parent=1 // pred_region
      %228 = dma.done [#allocation4], 32
    $region29: #{tpu_custom_call.1} parent=1 // pred_fallthru
      _
    // Predicated region
    $region30: #{tpu_custom_call.1} parent=1 // pred_check
      _
    $region31: #{tpu_custom_call.1} parent=1 // pred_check_branch
      %230 = sbr.rel (0) target = $region33
    $region32: #{tpu_custom_call.1} parent=1 // pred_region
      %232 = dma.done [#allocation9], 32
    $region33: #{tpu_custom_call.1} parent=1 // pred_fallthru
      _
    %233 = vsyncpa [#allocation3], 1
    %234 = vsyncpa [#allocation6], 1
    %235 = vsyncpa [#allocation4], 1
    %236 = vsyncpa [#allocation9], 1

</llo_original>
